<compile_context>
chip_gen: v7x
topology: tpu7x:2x2x1
jax: 0.10.0
libtpu: 0.0.40
codegen_flags: <defaults>
</compile_context>

<pallas_src>
import functools
import math

import jax
import jax.numpy as jnp
from jax import lax
from jax.experimental import pallas as pl
from jax.experimental.pallas import tpu as pltpu


# ----------------------------------------------------------------------------
# VMEM budget: query the chip, leave ~25% headroom for compiler scratch and
# double-buffered BlockSpecs (v7x: ~48 MiB of 64; v5e/v6e: ~96 MiB of 128).
# ----------------------------------------------------------------------------
def _vmem_limit_bytes():
    cap = None
    try:
        info = pltpu.get_tpu_info()
        cap = getattr(info, "vmem_capacity_bytes", None)
    except Exception:
        cap = None
    if not cap or cap <= 0:
        cap = 64 * 1024 * 1024  # conservative (v7x-sized)
    return int(cap) * 3 // 4


VMEM_LIMIT_BYTES = _vmem_limit_bytes()

SUBLANE_M = 16   # bf16 packs 2 rows/sublane -> keep M tiles 16-aligned
LANE = 128


def _pick_tile(dim, pref, align):
    """Largest tile <= pref that is a multiple of `align` and divides `dim`.
    Falls back to the full dim when dim is not align-divisible (toy dims)."""
    if dim <= align or dim % align != 0:
        return dim
    t = (min(pref, dim) // align) * align
    while dim % t != 0:
        t -= align
    return t


def _pad_rows(x, multiple):
    """Pad axis 0 with zeros up to a multiple of `multiple` (keeps tiles aligned)."""
    m = x.shape[0]
    pad = (-m) % multiple
    if pad:
        x = jnp.pad(x, ((0, pad), (0, 0)))
    return x


def _heads_per_group(num_heads, head_dim):
    """Heads per attention program: aim for >=128-lane head-group slabs."""
    if head_dim % LANE == 0:
        return 1
    if head_dim < LANE and LANE % head_dim == 0:
        g = LANE // head_dim
        if num_heads % g == 0:
            return g
    return num_heads  # one group spanning the full hidden dim (toy sizes)


# ----------------------------------------------------------------------------
# Pallas kernels
# ----------------------------------------------------------------------------

def _linear_kernel(x_ref, w_ref, b_ref, o_ref, acc_ref, *, activation):
    """Tiled matmul: grid (M tiles, N tiles, K tiles); bias + activation epilogue."""
    k = pl.program_id(2)

    @pl.when(k == 0)
    def _():
        acc_ref[...] = jnp.zeros_like(acc_ref)

    acc_ref[...] += jnp.dot(x_ref[...], w_ref[...],
                            preferred_element_type=jnp.float32)

    @pl.when(k == pl.num_programs(2) - 1)
    def _():
        y = acc_ref[...] + b_ref[...].astype(jnp.float32)
        if activation == "gelu":
            # exact (erf-based) GELU, matching BERT's default "gelu"
            y = 0.5 * y * (1.0 + lax.erf(y * jnp.float32(1.0 / math.sqrt(2.0))))
        elif activation == "tanh":
            y = jnp.tanh(y)
        o_ref[...] = y.astype(o_ref.dtype)


def _linear_add_ln_kernel(x_ref, w_ref, b_ref, res_ref, g_ref, bb_ref,
                          o_ref, acc_ref, *, eps):
    """Tiled matmul with fused bias + residual-add + LayerNorm epilogue.

    Grid is (M tiles, K tiles); the full output row (N) stays in one block so the
    LayerNorm reduction over the hidden dim runs in the last-K epilogue."""
    k = pl.program_id(1)

    @pl.when(k == 0)
    def _():
        acc_ref[...] = jnp.zeros_like(acc_ref)

    acc_ref[...] += jnp.dot(x_ref[...], w_ref[...],
                            preferred_element_type=jnp.float32)

    @pl.when(k == pl.num_programs(1) - 1)
    def _():
        y = (acc_ref[...] + b_ref[...].astype(jnp.float32)
             + res_ref[...].astype(jnp.float32))
        mean = jnp.mean(y, axis=-1, keepdims=True)
        var = jnp.mean((y - mean) ** 2, axis=-1, keepdims=True)
        y = (y - mean) * lax.rsqrt(var + eps)
        o_ref[...] = (y * g_ref[...].astype(jnp.float32)
                      + bb_ref[...].astype(jnp.float32)).astype(o_ref.dtype)


def _ln_kernel(x_ref, g_ref, b_ref, o_ref, *, eps):
    """LayerNorm over the last dim (embeddings path)."""
    x = x_ref[...].astype(jnp.float32)
    mean = jnp.mean(x, axis=-1, keepdims=True)
    var = jnp.mean((x - mean) ** 2, axis=-1, keepdims=True)
    y = (x - mean) * lax.rsqrt(var + eps)
    o_ref[...] = (y * g_ref[...].astype(jnp.float32)
                  + b_ref[...].astype(jnp.float32)).astype(o_ref.dtype)


def _attention_kernel(qkv_ref, m_ref, o_ref, *, heads_per_group, head_dim, scale):
    """One (batch, head-group) program of multi-head attention.

    qkv_ref block: (1, S, 3*GD) bf16 laid out as [q_group | k_group | v_group]
    (weights were regrouped at prepare time). Each head's context is stored
    directly into its output lane slice; only `heads_per_group` SxS score
    buffers are ever live.
    """
    blk = qkv_ref[0]                                  # [S, 3*GD] bf16
    m = m_ref[0].astype(jnp.float32)                  # [1, S] additive mask
    gd = heads_per_group * head_dim
    q = blk[:, 0:gd]
    kk = blk[:, gd:2 * gd]
    v = blk[:, 2 * gd:3 * gd]
    # NOTE: full SxS scores per head; fine for BERT-scale S. For very long S this
    # should become flash-style KV tiling with online softmax.
    for h in range(heads_per_group):
        sl = slice(h * head_dim, (h + 1) * head_dim)
        qh = q[:, sl]
        kh = kk[:, sl]
        vh = v[:, sl]
        s = jnp.dot(qh, kh.T, preferred_element_type=jnp.float32) * scale + m
        s = s - jnp.max(s, axis=-1, keepdims=True)
        p = jnp.exp(s)
        p = p / jnp.sum(p, axis=-1, keepdims=True)    # exact softmax (matches torch)
        ctx = jnp.dot(p.astype(vh.dtype), vh, preferred_element_type=jnp.float32)
        o_ref[0, :, sl] = ctx.astype(o_ref.dtype)


def _pooler_classifier_kernel(x_ref, wp_ref, bp_ref, wc_ref, bc_ref, o_ref):
    """Fused pooler (tanh(W x0 + b)) + classifier + softmax(dim=1)."""
    pooled = jnp.tanh(
        jnp.dot(x_ref[...], wp_ref[...], preferred_element_type=jnp.float32)
        + bp_ref[...].astype(jnp.float32))
    logits = (jnp.dot(pooled.astype(wc_ref.dtype), wc_ref[...],
                      preferred_element_type=jnp.float32)
              + bc_ref[...].astype(jnp.float32))
    logits = logits - jnp.max(logits, axis=-1, keepdims=True)
    e = jnp.exp(logits)
    o_ref[...] = (e / jnp.sum(e, axis=-1, keepdims=True)).astype(o_ref.dtype)


# ----------------------------------------------------------------------------
# pallas_call wrappers
# ----------------------------------------------------------------------------

def linear(x, w, b, activation="none", out_dtype=None):
    out_dtype = out_dtype or x.dtype
    M0 = x.shape[0]
    x = _pad_rows(x, SUBLANE_M)
    M, K = x.shape
    N = w.shape[1]
    tm = _pick_tile(M, 512, SUBLANE_M)
    tk = _pick_tile(K, 512, LANE)
    tn = _pick_tile(N, 512, LANE)
    kernel = functools.partial(_linear_kernel, activation=activation)
    out = pl.pallas_call(
        kernel,
        out_shape=jax.ShapeDtypeStruct((M, N), out_dtype),
        grid=(M // tm, N // tn, K // tk),
        in_specs=[
            pl.BlockSpec((tm, tk), lambda i, j, k: (i, k)),
            # TODO(synk): if weight DMA is still exposed after the bigger tiles,
            # sweep pipeline_mode=pl.Buffered(3) on this streamed weight spec.
            pl.BlockSpec((tk, tn), lambda i, j, k: (k, j)),
            pl.BlockSpec((1, tn), lambda i, j, k: (0, j)),
        ],
        out_specs=pl.BlockSpec((tm, tn), lambda i, j, k: (i, j)),
        scratch_shapes=[pltpu.VMEM((tm, tn), jnp.float32)],
        compiler_params=pltpu.CompilerParams(
            dimension_semantics=("parallel", "parallel", "arbitrary"),
            vmem_limit_bytes=VMEM_LIMIT_BYTES),
    )(x, w, b)
    return out if M == M0 else out[:M0]


def linear_add_layernorm(x, w, b, residual, gamma, beta, eps=1e-12,
                         out_dtype=None):
    """y = LayerNorm(x @ w + b + residual), add+LN fused as the matmul epilogue."""
    out_dtype = out_dtype or residual.dtype
    M0 = x.shape[0]
    x = _pad_rows(x, SUBLANE_M)
    residual = _pad_rows(residual, SUBLANE_M)
    M, K = x.shape
    N = w.shape[1]
    tm = _pick_tile(M, 512, SUBLANE_M)
    tk = _pick_tile(K, 512, LANE)
    kernel = functools.partial(_linear_add_ln_kernel, eps=eps)
    out = pl.pallas_call(
        kernel,
        out_shape=jax.ShapeDtypeStruct((M, N), out_dtype),
        grid=(M // tm, K // tk),
        in_specs=[
            pl.BlockSpec((tm, tk), lambda i, k: (i, k)),
            pl.BlockSpec((tk, N), lambda i, k: (k, 0)),
            pl.BlockSpec((1, N), lambda i, k: (0, 0)),
            pl.BlockSpec((tm, N), lambda i, k: (i, 0)),
            pl.BlockSpec((1, N), lambda i, k: (0, 0)),
            pl.BlockSpec((1, N), lambda i, k: (0, 0)),
        ],
        out_specs=pl.BlockSpec((tm, N), lambda i, k: (i, 0)),
        scratch_shapes=[pltpu.VMEM((tm, N), jnp.float32)],
        compiler_params=pltpu.CompilerParams(
            dimension_semantics=("parallel", "arbitrary"),
            vmem_limit_bytes=VMEM_LIMIT_BYTES),
    )(x, w, b, residual, gamma, beta)
    return out if M == M0 else out[:M0]


def layernorm(x, gamma, beta, eps=1e-12, out_dtype=jnp.bfloat16):
    M0, H = x.shape
    x = _pad_rows(x, SUBLANE_M)
    M = x.shape[0]
    tm = _pick_tile(M, 1024, SUBLANE_M)
    kernel = functools.partial(_ln_kernel, eps=eps)
    out = pl.pallas_call(
        kernel,
        out_shape=jax.ShapeDtypeStruct((M, H), out_dtype),
        grid=(M // tm,),
        in_specs=[
            pl.BlockSpec((tm, H), lambda i: (i, 0)),
            pl.BlockSpec((1, H), lambda i: (0, 0)),
            pl.BlockSpec((1, H), lambda i: (0, 0)),
        ],
        out_specs=pl.BlockSpec((tm, H), lambda i: (i, 0)),
        compiler_params=pltpu.CompilerParams(
            dimension_semantics=("parallel",),
            vmem_limit_bytes=VMEM_LIMIT_BYTES),
    )(x, gamma, beta)
    return out if M == M0 else out[:M0]


def multi_head_attention(qkv, add_mask, num_heads):
    """qkv: [B, S, 3H] with per-head-group [q|k|v] lane layout (see prepare_params);
    add_mask: [B, 1, S] additive."""
    B, S, H3 = qkv.shape
    H = H3 // 3
    D = H // num_heads
    G = _heads_per_group(num_heads, D)
    GD = G * D
    n_groups = num_heads // G
    scale = 1.0 / math.sqrt(D)
    kernel = functools.partial(_attention_kernel, heads_per_group=G,
                               head_dim=D, scale=scale)
    return pl.pallas_call(
        kernel,
        out_shape=jax.ShapeDtypeStruct((B, S, H), qkv.dtype),
        grid=(B, n_groups),
        in_specs=[
            pl.BlockSpec((1, S, 3 * GD), lambda b, g: (b, 0, g)),
            pl.BlockSpec((1, 1, S), lambda b, g: (b, 0, 0)),
        ],
        out_specs=pl.BlockSpec((1, S, GD), lambda b, g: (b, 0, g)),
        compiler_params=pltpu.CompilerParams(
            dimension_semantics=("parallel", "parallel"),
            vmem_limit_bytes=VMEM_LIMIT_BYTES),
    )(qkv, add_mask)


def classifier_head(x, wp, bp, wc, bc):
    """Fused pooler + classifier + softmax; tiny tensors, single VMEM block."""
    B = x.shape[0]
    L = wc.shape[1]
    return pl.pallas_call(
        _pooler_classifier_kernel,
        out_shape=jax.ShapeDtypeStruct((B, L), jnp.float32),
        compiler_params=pltpu.CompilerParams(vmem_limit_bytes=VMEM_LIMIT_BYTES),
    )(x, wp, bp, wc, bc)


# ----------------------------------------------------------------------------
# BERT config / deterministic parameter init / param preparation
# ----------------------------------------------------------------------------

CONFIG = dict(
    vocab_size=100,
    hidden_size=32,
    num_heads=4,
    intermediate_size=64,
    num_layers=2,
    max_position=16,
    type_vocab_size=2,
    num_labels=3,
)


def init_params(key, cfg):
    H = cfg["hidden_size"]
    I = cfg["intermediate_size"]
    L = cfg["num_labels"]

    def nrm(k, shape):
        return jax.random.normal(k, shape, dtype=jnp.float32) * 0.02

    keys = iter(jax.random.split(key, 8 + cfg["num_layers"] * 8))
    p = {
        "word_emb": nrm(next(keys), (cfg["vocab_size"], H)),
        "pos_emb": nrm(next(keys), (cfg["max_position"], H)),
        "type_emb": nrm(next(keys), (cfg["type_vocab_size"], H)),
        "emb_ln_g": jnp.ones((1, H), jnp.float32),
        "emb_ln_b": jnp.zeros((1, H), jnp.float32),
        "pooler_w": nrm(next(keys), (H, H)),
        "pooler_b": jnp.zeros((1, H), jnp.float32),
        "cls_w": nrm(next(keys), (H, L)),
        "cls_b": jnp.zeros((1, L), jnp.float32),
        "layers": [],
    }
    for _ in range(cfg["num_layers"]):
        layer = {
            "wq": nrm(next(keys), (H, H)), "bq": jnp.zeros((1, H), jnp.float32),
            "wk": nrm(next(keys), (H, H)), "bk": jnp.zeros((1, H), jnp.float32),
            "wv": nrm(next(keys), (H, H)), "bv": jnp.zeros((1, H), jnp.float32),
            "wo": nrm(next(keys), (H, H)), "bo": jnp.zeros((1, H), jnp.float32),
            "ln1_g": jnp.ones((1, H), jnp.float32), "ln1_b": jnp.zeros((1, H), jnp.float32),
            "wi": nrm(next(keys), (H, I)), "bi": jnp.zeros((1, I), jnp.float32),
            "wout": nrm(next(keys), (I, H)), "bout": jnp.zeros((1, H), jnp.float32),
            "ln2_g": jnp.ones((1, H), jnp.float32), "ln2_b": jnp.zeros((1, H), jnp.float32),
        }
        p["layers"].append(layer)
    return p


def _fuse_qkv_grouped(wq, wk, wv, heads_per_group, head_dim):
    """Interleave Q/K/V columns per head group: [q_g0|k_g0|v_g0 | q_g1|k_g1|v_g1 | ...]
    so one attention program's BlockSpec block is a single contiguous lane slab."""
    gd = heads_per_group * head_dim
    H = wq.shape[1]
    pieces = []
    for g in range(H // gd):
        sl = slice(g * gd, (g + 1) * gd)
        pieces += [wq[:, sl], wk[:, sl], wv[:, sl]]
    return jnp.concatenate(pieces, axis=1)


def prepare_params(p, cfg):
    """Fuse Q/K/V into one grouped [H, 3H] matmul and cast matmul weights to bf16.
    Biases and LayerNorm params stay f32 (added in the f32 epilogue)."""
    H = cfg["hidden_size"]
    NH = cfg["num_heads"]
    D = H // NH
    G = _heads_per_group(NH, D)
    bf = lambda a: a.astype(jnp.bfloat16)
    out = {
        "word_emb": p["word_emb"], "pos_emb": p["pos_emb"], "type_emb": p["type_emb"],
        "emb_ln_g": p["emb_ln_g"], "emb_ln_b": p["emb_ln_b"],
        "pooler_w": bf(p["pooler_w"]), "pooler_b": p["pooler_b"],
        "cls_w": bf(p["cls_w"]), "cls_b": p["cls_b"],
        "layers": [],
    }
    for l in p["layers"]:
        out["layers"].append({
            "wqkv": bf(_fuse_qkv_grouped(l["wq"], l["wk"], l["wv"], G, D)),
            "bqkv": _fuse_qkv_grouped(l["bq"], l["bk"], l["bv"], G, D),
            "wo": bf(l["wo"]), "bo": l["bo"],
            "ln1_g": l["ln1_g"], "ln1_b": l["ln1_b"],
            "wi": bf(l["wi"]), "bi": l["bi"],
            "wout": bf(l["wout"]), "bout": l["bout"],
            "ln2_g": l["ln2_g"], "ln2_b": l["ln2_b"],
        })
    return out


# ----------------------------------------------------------------------------
# Forward pass (BertClassifier.forward)
# ----------------------------------------------------------------------------

def bert_classifier_forward(params, input_ids, attention_mask, token_type_ids, cfg):
    B, S = input_ids.shape
    H = cfg["hidden_size"]
    NH = cfg["num_heads"]

    # ---- embeddings: gathers + sum in one XLA op (no broadcast f32 pos copy),
    #      LayerNorm in a Pallas kernel ----
    word = jnp.take(params["word_emb"], input_ids, axis=0)            # [B,S,H] f32
    typ = jnp.take(params["type_emb"], token_type_ids, axis=0)        # [B,S,H] f32
    pos = params["pos_emb"][:S]                                       # [S,H]   f32
    emb = (word + typ + pos[None, :, :]).reshape(B * S, H).astype(jnp.bfloat16)
    x = layernorm(emb, params["emb_ln_g"], params["emb_ln_b"],
                  out_dtype=jnp.bfloat16)                             # [B*S,H] bf16

    # additive attention mask: 0 for keep, -10000 for masked -> [B,1,S]
    add_mask = ((1.0 - attention_mask.astype(jnp.float32)) * -10000.0)[:, None, :]

    # ---- encoder layers (dropout omitted: inference) ----
    for lyr in params["layers"]:
        # fused (head-group interleaved) QKV projection: one matmul, x read once
        qkv = linear(x, lyr["wqkv"], lyr["bqkv"])                     # [B*S,3H] bf16
        ctx = multi_head_attention(qkv.reshape(B, S, 3 * H), add_mask, NH)  # [B,S,H]
        # attention output projection with fused residual-add + LayerNorm
        x = linear_add_layernorm(ctx.reshape(B * S, H), lyr["wo"], lyr["bo"],
                                 x, lyr["ln1_g"], lyr["ln1_b"])       # [B*S,H] bf16
        # FFN: GELU fused into the first matmul, add+LN fused into the second
        inter = linear(x, lyr["wi"], lyr["bi"], activation="gelu")    # [B*S,I] bf16
        x = linear_add_layernorm(inter, lyr["wout"], lyr["bout"],
                                 x, lyr["ln2_g"], lyr["ln2_b"])       # [B*S,H] bf16

    # ---- pooler (tanh on first token) + classifier + softmax(dim=1), fused ----
    first_tok = x.reshape(B, S, H)[:, 0, :]                           # [B,H] bf16
    probs = classifier_head(first_tok, params["pooler_w"], params["pooler_b"],
                            params["cls_w"], params["cls_b"])         # [B,L] f32
    return probs


# ----------------------------------------------------------------------------
# main
# ----------------------------------------------------------------------------

if __name__ == "__main__":
    cfg = CONFIG
    B, S = 2, 8

    key = jax.random.PRNGKey(0)
    k_param, k_ids, k_type = jax.random.split(key, 3)

    params = prepare_params(init_params(k_param, cfg), cfg)

    input_ids = jax.random.randint(k_ids, (B, S), 0, cfg["vocab_size"], dtype=jnp.int32)
    token_type_ids = jax.random.randint(k_type, (B, S), 0, cfg["type_vocab_size"],
                                        dtype=jnp.int32)
    attention_mask = jnp.ones((B, S), jnp.int32).at[1, S - 2:].set(0)  # pad last 2 of row 1

    probs = bert_classifier_forward(params, input_ids, attention_mask,
                                    token_type_ids, cfg)
    probs = jax.block_until_ready(probs)

    assert probs.shape == (B, cfg["num_labels"])
    assert bool(jnp.all(jnp.isfinite(probs)))
    assert bool(jnp.allclose(jnp.sum(probs, axis=1), 1.0, atol=1e-5))
    print("KERNEL_OK")
</pallas_src>

<mosaic_0001>
module attributes {stable_mosaic.version = 11 : i64} {
  func.func @_ln_kernel(%arg0: i32, %arg1: memref<16x32xbf16, #tpu.memory_space<vmem>>, %arg2: memref<1x32xf32, #tpu.memory_space<vmem>>, %arg3: memref<1x32xf32, #tpu.memory_space<vmem>>, %arg4: memref<16x32xbf16, #tpu.memory_space<vmem>>) attributes {dimension_semantics = [#tpu.dimension_semantics<parallel>], iteration_bounds = array<i64: 1>, scalar_prefetch = 0 : i64, scratch_operands = 0 : i64, tpu.core_type = #tpu.core_type<tc>, window_params = [{transform_indices = @transform_0, window_bounds = array<i64: 16, 32>}, {pipeline_mode = #tpu.pipeline_mode<synchronous>, transform_indices = @transform_1, window_bounds = array<i64: 1, 32>}, {pipeline_mode = #tpu.pipeline_mode<synchronous>, transform_indices = @transform_2, window_bounds = array<i64: 1, 32>}, {transform_indices = @transform_3, window_bounds = array<i64: 16, 32>}]} {
    %c0 = arith.constant 0 : index
    %c0_0 = arith.constant 0 : index
    %0 = vector.load %arg1[%c0, %c0_0] : memref<16x32xbf16, #tpu.memory_space<vmem>>, vector<16x32xbf16>
    %1 = arith.extf %0 : vector<16x32xbf16> to vector<16x32xf32>
    %cst = arith.constant dense<0.000000e+00> : vector<16xf32>
    %2 = vector.multi_reduction <add>, %1, %cst [1] : vector<16x32xf32> to vector<16xf32>
    %3 = vector.shape_cast %2 : vector<16xf32> to vector<16x1xf32>
    %cst_1 = arith.constant 3.200000e+01 : f32
    %4 = vector.broadcast %cst_1 : f32 to vector<16x1xf32>
    %5 = arith.divf %3, %4 : vector<16x1xf32>
    %6 = vector.broadcast %5 : vector<16x1xf32> to vector<16x32xf32>
    %7 = arith.subf %1, %6 : vector<16x32xf32>
    %8 = arith.mulf %7, %7 : vector<16x32xf32>
    %cst_2 = arith.constant dense<0.000000e+00> : vector<16xf32>
    %9 = vector.multi_reduction <add>, %8, %cst_2 [1] : vector<16x32xf32> to vector<16xf32>
    %10 = vector.shape_cast %9 : vector<16xf32> to vector<16x1xf32>
    %cst_3 = arith.constant 3.200000e+01 : f32
    %11 = vector.broadcast %cst_3 : f32 to vector<16x1xf32>
    %12 = arith.divf %10, %11 : vector<16x1xf32>
    %13 = vector.broadcast %5 : vector<16x1xf32> to vector<16x32xf32>
    %14 = arith.subf %1, %13 : vector<16x32xf32>
    %cst_4 = arith.constant 9.99999996E-13 : f32
    %15 = vector.broadcast %cst_4 : f32 to vector<16x1xf32>
    %16 = arith.addf %12, %15 : vector<16x1xf32>
    %17 = math.rsqrt %16 : vector<16x1xf32>
    %18 = vector.broadcast %17 : vector<16x1xf32> to vector<16x32xf32>
    %19 = arith.mulf %14, %18 : vector<16x32xf32>
    %c0_5 = arith.constant 0 : index
    %c0_6 = arith.constant 0 : index
    %20 = vector.load %arg2[%c0_5, %c0_6] : memref<1x32xf32, #tpu.memory_space<vmem>>, vector<1x32xf32>
    %21 = vector.broadcast %20 : vector<1x32xf32> to vector<16x32xf32>
    %22 = arith.mulf %19, %21 : vector<16x32xf32>
    %c0_7 = arith.constant 0 : index
    %c0_8 = arith.constant 0 : index
    %23 = vector.load %arg3[%c0_7, %c0_8] : memref<1x32xf32, #tpu.memory_space<vmem>>, vector<1x32xf32>
    %24 = vector.broadcast %23 : vector<1x32xf32> to vector<16x32xf32>
    %25 = arith.addf %22, %24 : vector<16x32xf32>
    %26 = arith.truncf %25 : vector<16x32xf32> to vector<16x32xbf16>
    %c0_9 = arith.constant 0 : index
    %c0_10 = arith.constant 0 : index
    %27 = vector.load %arg4[%c0_9, %c0_10] : memref<16x32xbf16, #tpu.memory_space<vmem>>, vector<16x32xbf16>
    tpu.vector_store %arg4[%c0_9, %c0_10], %26 {strides = array<i32>} : memref<16x32xbf16, #tpu.memory_space<vmem>>, vector<16x32xbf16>,
    return
  }
  func.func @transform_0(%arg0: i32) -> (i32, i32) {
    %c0_i32 = arith.constant 0 : i32
    %c0_i32_0 = arith.constant 0 : i32
    return %arg0, %c0_i32 : i32, i32
  }
  func.func @transform_1(%arg0: i32) -> (i32, i32) {
    %c0_i32 = arith.constant 0 : i32
    %c0_i32_0 = arith.constant 0 : i32
    %c0_i32_1 = arith.constant 0 : i32
    return %c0_i32, %c0_i32_0 : i32, i32
  }
  func.func @transform_2(%arg0: i32) -> (i32, i32) {
    %c0_i32 = arith.constant 0 : i32
    %c0_i32_0 = arith.constant 0 : i32
    %c0_i32_1 = arith.constant 0 : i32
    return %c0_i32, %c0_i32_0 : i32, i32
  }
  func.func @transform_3(%arg0: i32) -> (i32, i32) {
    %c0_i32 = arith.constant 0 : i32
    %c0_i32_0 = arith.constant 0 : i32
    return %arg0, %c0_i32 : i32, i32
  }
}

</mosaic_0001>

<llo_original>
// kernel: tpu_custom_call.1
$region0: #{tpu_custom_call.1}
  #allocation0 [shape = 'u32[]', space=smem, size = 0x4, offset = 0x4, fixed_abs, tag = 'smem constant byte address 0x4 - core index']
  #allocation1 [shape = 'u32[144,128]{1,0:T(1,128)}', space=vmem, size = 0x12000, scoped, tag = 'internal scratch']
  %s0 = inlined_call_operand.hbm [shape: bf16[16,32], index: 0, kind: input, shape index: {}]
  %s1 = inlined_call_operand.vmem [shape: f32[1,32], index: 1, kind: input, shape index: {}]
  %s2 = inlined_call_operand.vmem [shape: f32[1,32], index: 2, kind: input, shape index: {}]
  %s3 = inlined_call_operand.hbm [shape: bf16[16,32], index: 3, kind: output, shape index: {}]
  %s4 = sld [smem:[#allocation0]]
  $region26: #{tpu_custom_call.1} parent=0
    _
  %s6 = ssub.s32 1, %s4
  %s7 = scalar_select 0, %s6, %s4
  $region1: #{tpu_custom_call.1} parent=0
    #allocation2 [shape = 'u8[4096]{0}', space=vmem, size = 0x1000, scoped, tag = 'input window, operand 0, single buffered']
    #allocation3 [shape = 's32[1]{0}', space=sflag, size = 0x4, scoped, tag = 'scoped memory for tpu_custom_call.1']
    #allocation4 [shape = 's32[1]{0}', space=sflag, size = 0x4, scoped, tag = 'scoped memory for tpu_custom_call.1']
    #allocation5 [shape = 'u8[4096]{0}', space=vmem, size = 0x1000, scoped, tag = 'output window, operand 0, single buffered']
    %8 = vsyncpa [#allocation3], 0
    %9 = vsyncpa [#allocation4], 0
    // Predicated region
    $region2: #{tpu_custom_call.1} parent=1 // pred_check
      _
    $region3: #{tpu_custom_call.1} parent=1 // pred_check_branch
      %11 = sbr.rel (0) target = $region5
    $region4: #{tpu_custom_call.1} parent=1 // pred_region
      %s13 = ssub.s32 128, 128
      %14 = vsyncadd [#allocation3], %s13
      %s15 = sshll.u32 [#allocation2], 4
      %s16 = int_to_ptr.vmem [resolvable:$true] %s15
      %21 = dma.hbm_to_vmem [thread:$0]  %s0, 128, %s16, [#allocation3], 64, 64, 4
    $region5: #{tpu_custom_call.1} parent=1 // pred_fallthru
      _
    // Predicated region
    $region6: #{tpu_custom_call.1} parent=1 // pred_check
      _
    $region7: #{tpu_custom_call.1} parent=1 // pred_check_branch
      %23 = sbr.rel (0) target = $region9
    $region8: #{tpu_custom_call.1} parent=1 // pred_region
      _
    $region9: #{tpu_custom_call.1} parent=1 // pred_fallthru
      _
    // Predicated region
    $region10: #{tpu_custom_call.1} parent=1 // pred_check
      _
    $region11: #{tpu_custom_call.1} parent=1 // pred_check_branch
      %25 = sbr.rel (0) target = $region13
    $region12: #{tpu_custom_call.1} parent=1 // pred_region
      _
    $region13: #{tpu_custom_call.1} parent=1 // pred_fallthru
      _
    // Predicated region
    $region14: #{tpu_custom_call.1} parent=1 // pred_check
      _
    $region15: #{tpu_custom_call.1} parent=1 // pred_check_branch
      %27 = sbr.rel (0) target = $region17
    $region16: #{tpu_custom_call.1} parent=1 // pred_region
      %28 = dma.done [#allocation3], 128
    $region17: #{tpu_custom_call.1} parent=1 // pred_fallthru
      _
    %v29 = vld [vmem:[#allocation2] sm:$0xf]
    %v30 = vld [vmem:[#allocation2 + $0x4] sm:$0xf]
    %v31 = vunpack.c.l.bf16 %v29
    %v32 = vunpack.c.l.bf16 %v30
    %vm33 = vcmask 261120
    %v34 = vsel %vm33, %v31, 0.0
    %35 = vadd.xlane.f32.xlu0 %v34
    %v36 = vpop.xlane.xlu0 %35
    %v37 = vsel %vm33, %v32, 0.0
    %38 = vadd.xlane.f32.xlu0 %v37
    %v39 = vpop.xlane.xlu0 %38
    %v40 = vrcp.pop 32.0
    %v41 = vmul.f32 %v36, %v40
    %v42 = vmul.f32 %v39, %v40
    %v43 = vsub.f32 %v31, %v41
    %v44 = vsub.f32 %v32, %v42
    %v45 = vmul.f32 %v43, %v43
    %v46 = vmul.f32 %v44, %v44
    %v47 = vsel %vm33, %v45, 0.0
    %48 = vadd.xlane.f32.xlu0 %v47
    %v49 = vpop.xlane.xlu0 %48
    %v50 = vsel %vm33, %v46, 0.0
    %51 = vadd.xlane.f32.xlu0 %v50
    %v52 = vpop.xlane.xlu0 %51
    %v53 = vmul.f32 %v49, %v40
    %v54 = vmul.f32 %v52, %v40
    %v55 = vadd.f32 %v53, 1e-12
    %v56 = vadd.f32 %v54, 1e-12
    %v57 = vrsqrt.pop %v55
    %v58 = vrsqrt.pop %v56
    %v59 = vmul.f32 %v43, %v57
    %v60 = vmul.f32 %v44, %v58
    %v61 = vld [vmem:[%s1] sm:$0x1]
    %v63 = vlaneseq
    %v64 = vshrl.u32 %v63, 7
    %v65 = vsub.s32 0, %v64
    %v66 = vrot.slane %v61, %v65
    %v68 = vmul.f32 %v59, %v66
    %v69 = vmul.f32 %v60, %v66
    %v70 = vld [vmem:[%s2] sm:$0x1]
    %v72 = vlaneseq
    %v73 = vshrl.u32 %v72, 7
    %v74 = vsub.s32 0, %v73
    %v75 = vrot.slane %v70, %v74
    %v77 = vadd.f32 %v68, %v75
    %v78 = vadd.f32 %v69, %v75
    %v79 = vpack.c.bf16 %v78, %v77
    %v81 = vunpack.c.l.b16 %v79
    %v82 = vunpack.c.h.b16 %v79
    %v83 = vpack.c.b16 %v81, %v81
    %v84 = vpack.c.b16 %v82, %v82
    %vm87 = vcmask 257024
    %88 = vst.msk [vmem:[#allocation5] sm:$0xf] %vm87, %v83
    %89 = vst.msk [vmem:[#allocation5 + $0x4] sm:$0xf] %vm87, %v84
    // Predicated region
    $region18: #{tpu_custom_call.1} parent=1 // pred_check
      _
    $region19: #{tpu_custom_call.1} parent=1 // pred_check_branch
      %91 = sbr.rel (0) target = $region21
    $region20: #{tpu_custom_call.1} parent=1 // pred_region
      %s93 = ssub.s32 128, 128
      %94 = vsyncadd [#allocation4], %s93
      %s95 = sshll.u32 [#allocation5], 4
      %s96 = int_to_ptr.vmem [resolvable:$true] %s95
      %101 = dma.vmem_to_hbm [thread:$0]  %s96, 128, %s3, [#allocation4], 64, 64, 4
    $region21: #{tpu_custom_call.1} parent=1 // pred_fallthru
      _
    // Predicated region
    $region22: #{tpu_custom_call.1} parent=1 // pred_check
      _
    $region23: #{tpu_custom_call.1} parent=1 // pred_check_branch
      %103 = sbr.rel (0) target = $region25
    $region24: #{tpu_custom_call.1} parent=1 // pred_region
      %104 = dma.done [#allocation4], 128
    $region25: #{tpu_custom_call.1} parent=1 // pred_fallthru
      _
    %105 = vsyncpa [#allocation3], 1
    %106 = vsyncpa [#allocation4], 1

</llo_original>
